<compile_context>
chip_gen: v7x
topology: tpu7x:2x2x1
jax: 0.10.0
libtpu: 0.0.40
codegen_flags: <defaults>
</compile_context>

<pallas_src>
import functools

import jax
import jax.numpy as jnp
from jax.experimental import pallas as pl
from jax.experimental.pallas import tpu as pltpu

MIN_VALUE = 6.1
MAX_VALUE = 6.2


def _round_up(a, b):
    return (a + b - 1) // b * b


def _fused_kernel(params_ref, x_ref, o_ref, *, C1, C2, min_value, max_value):
    # params_ref: SMEM f32[2*C1 + C1*C2 + C2] = [w1 | b1 | w2(C1,C2) | b2]
    # x_ref:      VMEM (1, 1,  TR, TL)   (batch-block, Cin=1, rows, lanes)
    # o_ref:      VMEM (1, C2, TR, TL)
    OFF_W1 = 0
    OFF_B1 = C1
    OFF_W2 = 2 * C1
    OFF_B2 = 2 * C1 + C1 * C2

    # Hoist all SMEM scalar reads once.
    w1 = [params_ref[OFF_W1 + c] for c in range(C1)]
    b1 = [params_ref[OFF_B1 + c] for c in range(C1)]
    w2 = [[params_ref[OFF_W2 + c * C2 + k] for k in range(C2)] for c in range(C1)]
    b2 = [params_ref[OFF_B2 + k] for k in range(C2)]

    x = x_ref[0, 0]  # (TR, TL), f32

    # Stage 1: ConvTranspose2d(1x1, Cin=1) + clamp, per intermediate channel c.
    v3 = [jnp.clip(x * w1[c] + b1[c], min_value, max_value) for c in range(C1)]

    # Stage 2: Conv2d(1x1): out_k = sum_c w2[c, k] * v3_c + b2[k]
    # Direct per-channel stores (no concatenate / sublane shuffling).
    for k in range(C2):
        acc = v3[0] * w2[0][k] + b2[k]
        for c in range(1, C1):
            acc = acc + v3[c] * w2[c][k]
        o_ref[0, k, :, :] = acc.astype(o_ref.dtype)


def model_forward(x_nchw, w_t, b_t, w_c, b_c,
                  min_value=MIN_VALUE, max_value=MAX_VALUE):
    """x_nchw: (N, 1, H, W) f32.
    w_t: ConvTranspose2d weight (Cin=1, C1, 1, 1), b_t: (C1,)
    w_c: Conv2d weight (C2, C1, 1, 1),             b_c: (C2,)
    Returns (N, C2, H, W) f32 (NCHW, matching PyTorch)."""
    N, Cin, H, W = x_nchw.shape
    assert Cin == 1, "module spec has a single input channel"
    C1 = w_t.shape[1]
    C2 = w_c.shape[0]
    HW = H * W

    # ---- Layout / tiling policy -------------------------------------------
    if HW % 128 == 0:
        # Sublane-dense: spatial -> (rows, 128) slab, tile over rows.
        L = 128
        R = HW // 128
        if R <= 8:
            tile_r = R                       # full (tiny) extent
        else:
            tile_r = min((R // 8) * 8, 2048)  # big, sublane-aligned row tile
            if N == 1:
                # Ensure >= 2 grid steps so v7x can use both TensorCores.
                tile_r = min(tile_r, max(8, _round_up(pl.cdiv(R, 2), 8)))
        tile_l = L
        num_t = pl.cdiv(R, tile_r)
        idx_map = lambda n, t: (n, 0, t, 0)
    else:
        # Fallback (HW not 128-aligned): lane tiling, masked partial last block.
        L = HW
        R = 1
        tile_r = 1
        tile_l = HW if HW <= 32768 else 32768
        num_t = pl.cdiv(HW, tile_l)
        idx_map = lambda n, t: (n, 0, 0, t)

    x4d = x_nchw.reshape(N, 1, R, L)  # pure reshape (Cin == 1)

    # Pack all weights/biases into one tiny SMEM blob.
    w1 = w_t.reshape(Cin, C1)[0]               # (C1,)   w1[c]   = W_t[0, c, 0, 0]
    w2 = jnp.transpose(w_c.reshape(C2, C1))    # (C1,C2) w2[c,k] = W_c[k, c, 0, 0]
    params = jnp.concatenate(
        [w1, b_t, w2.reshape(-1), b_c]).astype(jnp.float32)

    kernel = functools.partial(
        _fused_kernel, C1=C1, C2=C2, min_value=min_value, max_value=max_value)

    cost = pl.CostEstimate(
        flops=int(N * HW * (4 * C1 + 2 * C1 * C2)),
        transcendentals=0,
        bytes_accessed=int(4 * N * HW * (1 + C2) + 4 * params.shape[0]),
    )

    out4d = pl.pallas_call(
        kernel,
        out_shape=jax.ShapeDtypeStruct((N, C2, R, L), jnp.float32),
        grid=(N, num_t),
        in_specs=[
            pl.BlockSpec(memory_space=pltpu.MemorySpace.SMEM),   # params blob
            pl.BlockSpec((1, 1, tile_r, tile_l), idx_map),       # x tile
        ],
        out_specs=pl.BlockSpec((1, C2, tile_r, tile_l), idx_map),
        compiler_params=pltpu.CompilerParams(
            dimension_semantics=("parallel", "parallel")),
        cost_estimate=cost,
    )(params, x4d)

    return out4d.reshape(N, C2, H, W)


def _ref_forward(x, w_t, b_t, w_c, b_c, min_v, max_v):
    v1 = jnp.einsum("nchw,cdij->ndhw", x, w_t) + b_t.reshape(1, -1, 1, 1)
    v3 = jnp.clip(v1, min_v, max_v)
    v4 = jnp.einsum("ndhw,kdij->nkhw", v3, w_c) + b_c.reshape(1, -1, 1, 1)
    return v4


if __name__ == "__main__":
    key = jax.random.PRNGKey(0)
    k_x, k_wt, k_bt, k_wc, k_bc, k_x2 = jax.random.split(key, 6)

    # Module-spec input: (1, 1, 8, 8)  (HW=64 -> lane-tiled fallback path)
    x1 = jax.random.normal(k_x, (1, 1, 8, 8), dtype=jnp.float32)

    # Parameters (shapes from the module's __init__)
    w_t = jax.random.normal(k_wt, (1, 2, 1, 1), dtype=jnp.float32) * 0.5
    b_t = jax.random.normal(k_bt, (2,), dtype=jnp.float32) * 0.1
    w_c = jax.random.normal(k_wc, (4, 2, 1, 1), dtype=jnp.float32) * 0.5
    b_c = jax.random.normal(k_bc, (4,), dtype=jnp.float32) * 0.1

    out = model_forward(x1, w_t, b_t, w_c, b_c)
    jax.block_until_ready(out)
    ref = _ref_forward(x1, w_t, b_t, w_c, b_c, MIN_VALUE, MAX_VALUE)
    assert out.shape == (1, 4, 8, 8)
    assert jnp.allclose(out, ref, atol=1e-5, rtol=1e-5), "mismatch vs reference"

    # Secondary check: bigger spatial size (exercises the sublane-dense 4D
    # path and batching) and wide clamp bounds so the second conv's weights
    # are actually exercised (the narrow [6.1, 6.2] bounds make v3 ~constant).
    x2 = jax.random.normal(k_x2, (2, 1, 16, 16), dtype=jnp.float32)
    out2 = model_forward(x2, w_t, b_t, w_c, b_c, min_value=-10.0, max_value=10.0)
    jax.block_until_ready(out2)
    ref2 = _ref_forward(x2, w_t, b_t, w_c, b_c, -10.0, 10.0)
    assert out2.shape == (2, 4, 16, 16)
    assert jnp.allclose(out2, ref2, atol=1e-5, rtol=1e-5), "mismatch (wide clamp)"

    print("KERNEL_OK")
</pallas_src>

<mosaic_0001>
module attributes {stable_mosaic.version = 11 : i64} {
  func.func @_fused_kernel(%arg0: i32, %arg1: i32, %arg2: memref<16xf32, #tpu.memory_space<smem>>, %arg3: memref<1x1x1x64xf32, #tpu.memory_space<vmem>>, %arg4: memref<1x4x1x64xf32, #tpu.memory_space<vmem>>) attributes {dimension_semantics = [#tpu.dimension_semantics<parallel>, #tpu.dimension_semantics<parallel>], iteration_bounds = array<i64: 1, 1>, scalar_prefetch = 0 : i64, scratch_operands = 0 : i64, tpu.core_type = #tpu.core_type<tc>, window_params = [{transform_indices = @transform_0, window_bounds = array<i64: 16>}, {transform_indices = @transform_1, window_bounds = array<i64: 1, 1, 1, 64>}, {transform_indices = @transform_2, window_bounds = array<i64: 1, 4, 1, 64>}]} {
    %c0 = arith.constant 0 : index
    %0 = memref.load %arg2[%c0] : memref<16xf32, #tpu.memory_space<smem>>
    %c1 = arith.constant 1 : index
    %1 = memref.load %arg2[%c1] : memref<16xf32, #tpu.memory_space<smem>>
    %c2 = arith.constant 2 : index
    %2 = memref.load %arg2[%c2] : memref<16xf32, #tpu.memory_space<smem>>
    %c3 = arith.constant 3 : index
    %3 = memref.load %arg2[%c3] : memref<16xf32, #tpu.memory_space<smem>>
    %c4 = arith.constant 4 : index
    %4 = memref.load %arg2[%c4] : memref<16xf32, #tpu.memory_space<smem>>
    %c5 = arith.constant 5 : index
    %5 = memref.load %arg2[%c5] : memref<16xf32, #tpu.memory_space<smem>>
    %c6 = arith.constant 6 : index
    %6 = memref.load %arg2[%c6] : memref<16xf32, #tpu.memory_space<smem>>
    %c7 = arith.constant 7 : index
    %7 = memref.load %arg2[%c7] : memref<16xf32, #tpu.memory_space<smem>>
    %c8 = arith.constant 8 : index
    %8 = memref.load %arg2[%c8] : memref<16xf32, #tpu.memory_space<smem>>
    %c9 = arith.constant 9 : index
    %9 = memref.load %arg2[%c9] : memref<16xf32, #tpu.memory_space<smem>>
    %c10 = arith.constant 10 : index
    %10 = memref.load %arg2[%c10] : memref<16xf32, #tpu.memory_space<smem>>
    %c11 = arith.constant 11 : index
    %11 = memref.load %arg2[%c11] : memref<16xf32, #tpu.memory_space<smem>>
    %c12 = arith.constant 12 : index
    %12 = memref.load %arg2[%c12] : memref<16xf32, #tpu.memory_space<smem>>
    %c13 = arith.constant 13 : index
    %13 = memref.load %arg2[%c13] : memref<16xf32, #tpu.memory_space<smem>>
    %c14 = arith.constant 14 : index
    %14 = memref.load %arg2[%c14] : memref<16xf32, #tpu.memory_space<smem>>
    %c15 = arith.constant 15 : index
    %15 = memref.load %arg2[%c15] : memref<16xf32, #tpu.memory_space<smem>>
    %c0_0 = arith.constant 0 : index
    %c0_1 = arith.constant 0 : index
    %c0_2 = arith.constant 0 : index
    %c0_3 = arith.constant 0 : index
    %16 = vector.load %arg3[%c0_0, %c0_1, %c0_2, %c0_3] : memref<1x1x1x64xf32, #tpu.memory_space<vmem>>, vector<1x1x1x64xf32>
    %17 = vector.shape_cast %16 : vector<1x1x1x64xf32> to vector<1x64xf32>
    %18 = vector.broadcast %0 : f32 to vector<1x64xf32>
    %19 = arith.mulf %17, %18 : vector<1x64xf32>
    %20 = vector.broadcast %2 : f32 to vector<1x64xf32>
    %21 = arith.addf %19, %20 : vector<1x64xf32>
    %cst = arith.constant 6.100000e+00 : f32
    %cst_4 = arith.constant 6.1999998 : f32
    %22 = vector.broadcast %cst : f32 to vector<1x64xf32>
    %23 = arith.maximumf %22, %21 : vector<1x64xf32>
    %24 = vector.broadcast %cst_4 : f32 to vector<1x64xf32>
    %25 = arith.minimumf %24, %23 : vector<1x64xf32>
    %26 = vector.broadcast %1 : f32 to vector<1x64xf32>
    %27 = arith.mulf %17, %26 : vector<1x64xf32>
    %28 = vector.broadcast %3 : f32 to vector<1x64xf32>
    %29 = arith.addf %27, %28 : vector<1x64xf32>
    %cst_5 = arith.constant 6.100000e+00 : f32
    %cst_6 = arith.constant 6.1999998 : f32
    %30 = vector.broadcast %cst_5 : f32 to vector<1x64xf32>
    %31 = arith.maximumf %30, %29 : vector<1x64xf32>
    %32 = vector.broadcast %cst_6 : f32 to vector<1x64xf32>
    %33 = arith.minimumf %32, %31 : vector<1x64xf32>
    %34 = vector.broadcast %4 : f32 to vector<1x64xf32>
    %35 = arith.mulf %25, %34 : vector<1x64xf32>
    %36 = vector.broadcast %12 : f32 to vector<1x64xf32>
    %37 = arith.addf %35, %36 : vector<1x64xf32>
    %38 = vector.broadcast %8 : f32 to vector<1x64xf32>
    %39 = arith.mulf %33, %38 : vector<1x64xf32>
    %40 = arith.addf %37, %39 : vector<1x64xf32>
    %c0_7 = arith.constant 0 : index
    %c0_8 = arith.constant 0 : index
    %c0_9 = arith.constant 0 : index
    %c0_10 = arith.constant 0 : index
    %41 = vector.load %arg4[%c0_7, %c0_8, %c0_9, %c0_10] : memref<1x4x1x64xf32, #tpu.memory_space<vmem>>, vector<1x1x1x64xf32>
    %42 = vector.shape_cast %41 : vector<1x1x1x64xf32> to vector<1x64xf32>
    %43 = vector.shape_cast %40 : vector<1x64xf32> to vector<1x1x1x64xf32>
    tpu.vector_store %arg4[%c0_7, %c0_8, %c0_9, %c0_10], %43 {strides = array<i32>} : memref<1x4x1x64xf32, #tpu.memory_space<vmem>>, vector<1x1x1x64xf32>,
    %44 = vector.broadcast %5 : f32 to vector<1x64xf32>
    %45 = arith.mulf %25, %44 : vector<1x64xf32>
    %46 = vector.broadcast %13 : f32 to vector<1x64xf32>
    %47 = arith.addf %45, %46 : vector<1x64xf32>
    %48 = vector.broadcast %9 : f32 to vector<1x64xf32>
    %49 = arith.mulf %33, %48 : vector<1x64xf32>
    %50 = arith.addf %47, %49 : vector<1x64xf32>
    %c0_11 = arith.constant 0 : index
    %c1_12 = arith.constant 1 : index
    %c0_13 = arith.constant 0 : index
    %c0_14 = arith.constant 0 : index
    %51 = vector.load %arg4[%c0_11, %c1_12, %c0_13, %c0_14] : memref<1x4x1x64xf32, #tpu.memory_space<vmem>>, vector<1x1x1x64xf32>
    %52 = vector.shape_cast %51 : vector<1x1x1x64xf32> to vector<1x64xf32>
    %53 = vector.shape_cast %50 : vector<1x64xf32> to vector<1x1x1x64xf32>
    tpu.vector_store %arg4[%c0_11, %c1_12, %c0_13, %c0_14], %53 {strides = array<i32>} : memref<1x4x1x64xf32, #tpu.memory_space<vmem>>, vector<1x1x1x64xf32>,
    %54 = vector.broadcast %6 : f32 to vector<1x64xf32>
    %55 = arith.mulf %25, %54 : vector<1x64xf32>
    %56 = vector.broadcast %14 : f32 to vector<1x64xf32>
    %57 = arith.addf %55, %56 : vector<1x64xf32>
    %58 = vector.broadcast %10 : f32 to vector<1x64xf32>
    %59 = arith.mulf %33, %58 : vector<1x64xf32>
    %60 = arith.addf %57, %59 : vector<1x64xf32>
    %c0_15 = arith.constant 0 : index
    %c2_16 = arith.constant 2 : index
    %c0_17 = arith.constant 0 : index
    %c0_18 = arith.constant 0 : index
    %61 = vector.load %arg4[%c0_15, %c2_16, %c0_17, %c0_18] : memref<1x4x1x64xf32, #tpu.memory_space<vmem>>, vector<1x1x1x64xf32>
    %62 = vector.shape_cast %61 : vector<1x1x1x64xf32> to vector<1x64xf32>
    %63 = vector.shape_cast %60 : vector<1x64xf32> to vector<1x1x1x64xf32>
    tpu.vector_store %arg4[%c0_15, %c2_16, %c0_17, %c0_18], %63 {strides = array<i32>} : memref<1x4x1x64xf32, #tpu.memory_space<vmem>>, vector<1x1x1x64xf32>,
    %64 = vector.broadcast %7 : f32 to vector<1x64xf32>
    %65 = arith.mulf %25, %64 : vector<1x64xf32>
    %66 = vector.broadcast %15 : f32 to vector<1x64xf32>
    %67 = arith.addf %65, %66 : vector<1x64xf32>
    %68 = vector.broadcast %11 : f32 to vector<1x64xf32>
    %69 = arith.mulf %33, %68 : vector<1x64xf32>
    %70 = arith.addf %67, %69 : vector<1x64xf32>
    %c0_19 = arith.constant 0 : index
    %c3_20 = arith.constant 3 : index
    %c0_21 = arith.constant 0 : index
    %c0_22 = arith.constant 0 : index
    %71 = vector.load %arg4[%c0_19, %c3_20, %c0_21, %c0_22] : memref<1x4x1x64xf32, #tpu.memory_space<vmem>>, vector<1x1x1x64xf32>
    %72 = vector.shape_cast %71 : vector<1x1x1x64xf32> to vector<1x64xf32>
    %73 = vector.shape_cast %70 : vector<1x64xf32> to vector<1x1x1x64xf32>
    tpu.vector_store %arg4[%c0_19, %c3_20, %c0_21, %c0_22], %73 {strides = array<i32>} : memref<1x4x1x64xf32, #tpu.memory_space<vmem>>, vector<1x1x1x64xf32>,
    return
  }
  func.func @transform_0(%arg0: i32, %arg1: i32) -> i32 {
    %c0_i32 = arith.constant 0 : i32
    %c0_i32_0 = arith.constant 0 : i32
    return %c0_i32 : i32
  }
  func.func @transform_1(%arg0: i32, %arg1: i32) -> (i32, i32, i32, i32) {
    %c0_i32 = arith.constant 0 : i32
    %c0_i32_0 = arith.constant 0 : i32
    %c0_i32_1 = arith.constant 0 : i32
    return %arg0, %c0_i32, %c0_i32_0, %arg1 : i32, i32, i32, i32
  }
  func.func @transform_2(%arg0: i32, %arg1: i32) -> (i32, i32, i32, i32) {
    %c0_i32 = arith.constant 0 : i32
    %c0_i32_0 = arith.constant 0 : i32
    %c0_i32_1 = arith.constant 0 : i32
    return %arg0, %c0_i32, %c0_i32_0, %arg1 : i32, i32, i32, i32
  }
}

</mosaic_0001>

<llo_original>
// kernel: tpu_custom_call.1
$region0: #{tpu_custom_call.1}
  #allocation0 [shape = 'u32[]', space=smem, size = 0x4, offset = 0x4, fixed_abs, tag = 'smem constant byte address 0x4 - core index']
  #allocation1 [shape = 'u32[144,128]{1,0:T(1,128)}', space=vmem, size = 0x12000, scoped, tag = 'internal scratch']
  %s0 = inlined_call_operand.hbm [shape: f32[16], index: 0, kind: input, shape index: {}]
  %s1 = inlined_call_operand.vmem [shape: f32[1,1,1,64], index: 1, kind: input, shape index: {}]
  %s2 = inlined_call_operand.hbm [shape: f32[1,4,1,64], index: 2, kind: output, shape index: {}]
  %s3 = sld [smem:[#allocation0]]
  $region22: #{tpu_custom_call.1} parent=0
    _
  %s5 = ssub.s32 1, %s3
  %s6 = scalar_select 0, %s5, %s3
  $region1: #{tpu_custom_call.1} parent=0
    #allocation2 [shape = 'u8[512]{0}', space=smem, size = 0x200, scoped, tag = 'input window, operand 0, single buffered']
    #allocation3 [shape = 's32[1]{0}', space=sflag, size = 0x4, scoped, tag = 'scoped memory for tpu_custom_call.1']
    #allocation4 [shape = 's32[1]{0}', space=sflag, size = 0x4, scoped, tag = 'scoped memory for tpu_custom_call.1']
    #allocation5 [shape = 'u8[2048]{0}', space=vmem, size = 0x800, scoped, tag = 'output window, operand 0, single buffered']
    %7 = vsyncpa [#allocation4], 0
    %8 = vsyncpa [#allocation3], 0
    // Predicated region
    $region2: #{tpu_custom_call.1} parent=1 // pred_check
      _
    $region3: #{tpu_custom_call.1} parent=1 // pred_check_branch
      %10 = sbr.rel (0) target = $region5
    $region4: #{tpu_custom_call.1} parent=1 // pred_region
      %s12 = ssub.s32 16, 16
      %13 = vsyncadd [#allocation4], %s12
      %16 = dma.hbm_to_smem %s0, 16, [#allocation2], [#allocation4]
    $region5: #{tpu_custom_call.1} parent=1 // pred_fallthru
      _
    // Predicated region
    $region6: #{tpu_custom_call.1} parent=1 // pred_check
      _
    $region7: #{tpu_custom_call.1} parent=1 // pred_check_branch
      %18 = sbr.rel (0) target = $region9
    $region8: #{tpu_custom_call.1} parent=1 // pred_region
      _
    $region9: #{tpu_custom_call.1} parent=1 // pred_fallthru
      _
    // Predicated region
    $region10: #{tpu_custom_call.1} parent=1 // pred_check
      _
    $region11: #{tpu_custom_call.1} parent=1 // pred_check_branch
      %20 = sbr.rel (0) target = $region13
    $region12: #{tpu_custom_call.1} parent=1 // pred_region
      %21 = dma.done [#allocation4], 16
    $region13: #{tpu_custom_call.1} parent=1 // pred_fallthru
      _
    %22 = sfence
    %s23 = sld [smem:[#allocation2]]
    %s24 = sld [smem:[#allocation2 + $0x1]]
    %s25 = sld [smem:[#allocation2 + $0x2]]
    %s26 = sld [smem:[#allocation2 + $0x3]]
    %s27 = sld [smem:[#allocation2 + $0x4]]
    %s28 = sld [smem:[#allocation2 + $0x5]]
    %s29 = sld [smem:[#allocation2 + $0x6]]
    %s30 = sld [smem:[#allocation2 + $0x7]]
    %s31 = sld [smem:[#allocation2 + $0x8]]
    %s32 = sld [smem:[#allocation2 + $0x9]]
    %s33 = sld [smem:[#allocation2 + $0xa]]
    %s34 = sld [smem:[#allocation2 + $0xb]]
    %s35 = sld [smem:[#allocation2 + $0xc]]
    %s36 = sld [smem:[#allocation2 + $0xd]]
    %s37 = sld [smem:[#allocation2 + $0xe]]
    %s38 = sld [smem:[#allocation2 + $0xf]]
    %v39 = vld [vmem:[%s1] sm:$0x1]
    %v40 = vstv %s23
    %v41 = vmul.f32 %v39, %v40
    %v42 = vstv %s25
    %v43 = vadd.f32 %v41, %v42
    %v44 = vmax.f32 %v43, 6.1
    %v45 = vmin.f32 %v44, 6.2
    %v46 = vstv %s24
    %v47 = vmul.f32 %v39, %v46
    %v48 = vstv %s26
    %v49 = vadd.f32 %v47, %v48
    %v50 = vmax.f32 %v49, 6.1
    %v51 = vmin.f32 %v50, 6.2
    %v52 = vstv %s27
    %v53 = vmul.f32 %v45, %v52
    %v54 = vstv %s35
    %v55 = vadd.f32 %v53, %v54
    %v56 = vstv %s31
    %v57 = vmul.f32 %v51, %v56
    %v58 = vadd.f32 %v55, %v57
    %vm59 = vcmask 516096
    %60 = vst.msk [vmem:[#allocation5] sm:$0x1] %vm59, %v58
    %v61 = vstv %s28
    %v62 = vmul.f32 %v45, %v61
    %v63 = vstv %s36
    %v64 = vadd.f32 %v62, %v63
    %v65 = vstv %s32
    %v66 = vmul.f32 %v51, %v65
    %v67 = vadd.f32 %v64, %v66
    %s68 = scalar_lea.vmem [#allocation5], 1
    %69 = vst.msk [vmem:[%s68] sm:$0x1] %vm59, %v67
    %v70 = vstv %s29
    %v71 = vmul.f32 %v45, %v70
    %v72 = vstv %s37
    %v73 = vadd.f32 %v71, %v72
    %v74 = vstv %s33
    %v75 = vmul.f32 %v51, %v74
    %v76 = vadd.f32 %v73, %v75
    %s77 = scalar_lea.vmem [#allocation5], 2
    %78 = vst.msk [vmem:[%s77] sm:$0x1] %vm59, %v76
    %v79 = vstv %s30
    %v80 = vmul.f32 %v45, %v79
    %v81 = vstv %s38
    %v82 = vadd.f32 %v80, %v81
    %v83 = vstv %s34
    %v84 = vmul.f32 %v51, %v83
    %v85 = vadd.f32 %v82, %v84
    %s86 = scalar_lea.vmem [#allocation5], 3
    %87 = vst.msk [vmem:[%s86] sm:$0x1] %vm59, %v85
    // Predicated region
    $region14: #{tpu_custom_call.1} parent=1 // pred_check
      _
    $region15: #{tpu_custom_call.1} parent=1 // pred_check_branch
      %89 = sbr.rel (0) target = $region17
    $region16: #{tpu_custom_call.1} parent=1 // pred_region
      %s91 = ssub.s32 64, 64
      %92 = vsyncadd [#allocation3], %s91
      %s93 = sshll.u32 [#allocation5], 4
      %s94 = int_to_ptr.vmem [resolvable:$true] %s93
      %99 = dma.vmem_to_hbm [thread:$0]  %s94, 64, %s2, [#allocation3], 16, 16, 1
    $region17: #{tpu_custom_call.1} parent=1 // pred_fallthru
      _
    // Predicated region
    $region18: #{tpu_custom_call.1} parent=1 // pred_check
      _
    $region19: #{tpu_custom_call.1} parent=1 // pred_check_branch
      %101 = sbr.rel (0) target = $region21
    $region20: #{tpu_custom_call.1} parent=1 // pred_region
      %102 = dma.done [#allocation3], 64
    $region21: #{tpu_custom_call.1} parent=1 // pred_fallthru
      _
    %103 = vsyncpa [#allocation3], 1
    %104 = vsyncpa [#allocation4], 1

</llo_original>
